<compile_context>
chip_gen: v7x
topology: tpu7x:2x2x1
jax: 0.10.0
libtpu: 0.0.40
codegen_flags: <defaults>
</compile_context>

<pallas_src>
import functools

import jax
import jax.numpy as jnp
from jax import lax
from jax.experimental import pallas as pl
from jax.experimental.pallas import tpu as pltpu

LANE = 128
SUB = 8          # sublane rows per in-register sub-tile (one f32 vreg)


def _int_power(u, n):
    """u ** n for a static non-negative integer n via a VPU multiply chain."""
    if n == 0:
        return jnp.ones_like(u)
    result = None
    base = u
    while n:
        if n & 1:
            result = base if result is None else result * base
        n >>= 1
        if n:
            base = base * base
    return result


def _focal_loss_kernel(x_ref, t_ref, out_ref, acc_ref, *, num_classes, gamma_int,
                       t_r, rows_valid, mask_tail, mask_rows):
    j = pl.program_id(1)

    @pl.when(j == 0)
    def _():
        acc_ref[...] = jnp.zeros_like(acc_ref)

    C = num_classes
    n_sub = t_r // SUB

    def subtile(i, carry):
        r0 = pl.multiple_of(i * SUB, SUB)
        tgt = t_ref[0, pl.ds(r0, SUB), :]                     # (SUB, 128) int32

        # Pass 1: running max over the (small) class axis; per-plane upcast so
        # no C*t_r*128 f32 temporary is ever materialized.
        m = x_ref[0, 0, pl.ds(r0, SUB), :].astype(jnp.float32)
        for c in range(1, C):
            m = jnp.maximum(m, x_ref[0, c, pl.ds(r0, SUB), :].astype(jnp.float32))

        # Pass 2: exp-sum + target-logit gather via a select chain (pure VPU/EUP).
        s = None
        xt = jnp.zeros_like(m)
        for c in range(C):
            xc = x_ref[0, c, pl.ds(r0, SUB), :].astype(jnp.float32)
            e = jnp.exp(xc - m)
            s = e if s is None else s + e
            xt = jnp.where(tgt == c, xc, xt)

        logpt = (xt - m) - jnp.log(s)                         # (SUB, 128)
        pt = jnp.exp(logpt)
        # Clamp: (1 - pt) can round slightly negative when pt ~ 1.
        focal = _int_power(jnp.maximum(1.0 - pt, 0.0), gamma_int)
        loss = -focal * logpt

        if mask_tail:       # (sub)lane-pad tail: padded targets carry -1 sentinel
            loss = jnp.where(tgt >= 0, loss, 0.0)
        if mask_rows:       # ragged last grid block: rows beyond the array extent
            loss = jnp.where(j * t_r + r0 < rows_valid, loss, 0.0)
        return carry + loss

    part = lax.fori_loop(0, n_sub, subtile,
                         jnp.zeros((SUB, LANE), jnp.float32),
                         unroll=min(n_sub, 8))
    acc_ref[...] += part                                      # one vreg RMW per step

    @pl.when(j == pl.num_programs(1) - 1)
    def _():
        out_ref[...] = jnp.sum(acc_ref[...]).reshape(1, 1, 1)


def _vmem_budget_bytes():
    """Bytes allowed for the double-buffered input pipeline (generation aware)."""
    try:
        cap = pltpu.get_tpu_info().vmem_capacity_bytes
    except Exception:
        cap = 64 << 20   # assume the smallest (v7x) if the query is unavailable
    return int(min(max(cap // 3, 16 << 20), 40 << 20))


def focal_loss(logits_nchw, target_nhw, *, gamma=7, alpha=None, size_average=True):
    """Focal loss matching PyTorch FocalLoss.forward (alpha=None)."""
    if alpha is not None:
        # TODO(synk): alpha class-weighting not implemented (module default is alpha=None).
        raise NotImplementedError("alpha weighting not implemented")
    gamma_int = int(gamma)
    assert gamma_int == gamma and gamma_int >= 0, "integer gamma expected"

    N, C, H, W = logits_nchw.shape
    HW = H * W
    R = pl.cdiv(HW, LANE)            # 128-lane rows needed for the spatial axis
    R_pad = SUB * pl.cdiv(R, SUB)    # rounded up to a sublane multiple only
    HW_pad = R_pad * LANE

    x = logits_nchw.reshape(N, C, HW)
    t = target_nhw.reshape(N, HW).astype(jnp.int32)
    mask_tail = HW_pad != HW
    if mask_tail:
        # Alignment pad only (free when HW % 1024 == 0). Targets are padded with
        # a -1 sentinel so the kernel masks the tail with one compare on the
        # already-loaded target tile (no iota mask).
        x = jnp.pad(x, ((0, 0), (0, 0), (0, HW_pad - HW)))
        t = jnp.pad(t, ((0, 0), (0, HW_pad - HW)), constant_values=-1)
    x = x.reshape(N, C, R_pad, LANE)
    t = t.reshape(N, R_pad, LANE)

    # Tile rows from a VMEM budget: 2x (double-buffered) logits + targets blocks.
    in_bytes = jnp.dtype(x.dtype).itemsize
    bytes_per_row = LANE * (C * in_bytes + 4)
    t_r = (_vmem_budget_bytes() // (2 * bytes_per_row) // SUB) * SUB
    t_r = max(SUB, min(t_r, 1024, R_pad))
    NB = pl.cdiv(R_pad, t_r)
    mask_rows = NB * t_r != R_pad            # ragged last block, no block padding

    vmem_need = 2 * t_r * LANE * (C * in_bytes + 4) + SUB * LANE * 4 + (1 << 14)
    vmem_limit = int(min(vmem_need + (8 << 20), 60 << 20))

    kernel = functools.partial(
        _focal_loss_kernel, num_classes=C, gamma_int=gamma_int, t_r=t_r,
        rows_valid=R_pad, mask_tail=mask_tail, mask_rows=mask_rows)

    partials = pl.pallas_call(
        kernel,
        out_shape=jax.ShapeDtypeStruct((N, 1, 1), jnp.float32),
        grid_spec=pltpu.PrefetchScalarGridSpec(
            num_scalar_prefetch=0,
            grid=(N, NB),
            in_specs=[
                pl.BlockSpec((1, C, t_r, LANE), lambda n, j: (n, 0, j, 0)),
                pl.BlockSpec((1, t_r, LANE), lambda n, j: (n, j, 0)),
            ],
            out_specs=pl.BlockSpec((1, 1, 1), lambda n, j: (n, 0, 0)),
            scratch_shapes=[pltpu.VMEM((SUB, LANE), jnp.float32)],
        ),
        compiler_params=pltpu.CompilerParams(
            dimension_semantics=("parallel", "arbitrary"),
            vmem_limit_bytes=vmem_limit,
        ),
    )(x, t)
    # TODO(synk): for N == 1 on v7x, an extra "parallel" spatial-chunk grid axis
    # would feed both TensorCores; omitted to keep the grid/raggedness simple.

    total = jnp.sum(partials)
    if size_average:
        return total / jnp.float32(N * HW)
    return total


if __name__ == "__main__":
    key = jax.random.PRNGKey(0)
    k_x, k_t = jax.random.split(key)

    N, C, H, W = 2, 4, 16, 16
    logits = jax.random.normal(k_x, (N, C, H, W), dtype=jnp.float32)
    target = jax.random.randint(k_t, (N, H, W), 0, C, dtype=jnp.int32)

    loss = focal_loss(logits, target, gamma=7, size_average=True)
    loss = jax.block_until_ready(loss)

    # Pure-JAX reference (matches PyTorch FocalLoss.forward with alpha=None).
    xr = jnp.transpose(logits.reshape(N, C, H * W), (0, 2, 1)).reshape(-1, C)
    tr = target.reshape(-1)
    logp = jax.nn.log_softmax(xr, axis=-1)
    logpt = jnp.take_along_axis(logp, tr[:, None], axis=1)[:, 0]
    pt = jnp.exp(logpt)
    ref = jnp.mean(-1.0 * (1.0 - pt) ** 7 * logpt)

    assert jnp.allclose(loss, ref, rtol=1e-5, atol=1e-5), (loss, ref)
    print("KERNEL_OK")
</pallas_src>

<mosaic_0001>
module attributes {stable_mosaic.version = 11 : i64} {
  func.func @_focal_loss_kernel(%arg0: i32, %arg1: i32, %arg2: memref<1x4x8x128xf32, #tpu.memory_space<vmem>>, %arg3: memref<1x8x128xi32, #tpu.memory_space<vmem>>, %arg4: memref<1x1x1xf32, #tpu.memory_space<vmem>>, %arg5: memref<8x128xf32, #tpu.memory_space<vmem>>) attributes {dimension_semantics = [#tpu.dimension_semantics<parallel>, #tpu.dimension_semantics<arbitrary>], iteration_bounds = array<i64: 2, 1>, scalar_prefetch = 0 : i64, scratch_operands = 1 : i64, tpu.core_type = #tpu.core_type<tc>, window_params = [{transform_indices = @transform_0, window_bounds = array<i64: 1, 4, 8, 128>}, {transform_indices = @transform_1, window_bounds = array<i64: 1, 8, 128>}, {transform_indices = @transform_2, window_bounds = array<i64: 1, 1, 1>}]} {
    %c0_i32 = arith.constant 0 : i32
    %0 = arith.cmpi eq, %arg1, %c0_i32 : i32
    %1 = arith.extui %0 : i1 to i32
    %c0_i32_0 = arith.constant 0 : i32
    %2 = arith.cmpi ne, %1, %c0_i32_0 : i32
    scf.if %2 {
      %cst_38 = arith.constant 0.000000e+00 : f32
      %86 = vector.broadcast %cst_38 : f32 to vector<8x128xf32>
      %c0_39 = arith.constant 0 : index
      %c0_40 = arith.constant 0 : index
      %87 = vector.load %arg5[%c0_39, %c0_40] : memref<8x128xf32, #tpu.memory_space<vmem>>, vector<8x128xf32>
      tpu.vector_store %arg5[%c0_39, %c0_40], %86 {strides = array<i32>} : memref<8x128xf32, #tpu.memory_space<vmem>>, vector<8x128xf32>,
    } else {
    }
    %cst = arith.constant 0.000000e+00 : f32
    %3 = vector.broadcast %cst : f32 to vector<8x128xf32>
    %c0_i32_1 = arith.constant 0 : i32
    %c8_i32 = arith.constant 8 : i32
    %4 = arith.muli %c0_i32_1, %c8_i32 : i32
    %5 = tpu.assume_multiple %4, 8 : i32
    %c0 = arith.constant 0 : index
    %6 = arith.index_cast %5 : i32 to index
    %c0_2 = arith.constant 0 : index
    %7 = vector.load %arg3[%c0, %6, %c0_2] : memref<1x8x128xi32, #tpu.memory_space<vmem>>, vector<1x8x128xi32>
    %8 = vector.shape_cast %7 : vector<1x8x128xi32> to vector<8x128xi32>
    %c0_3 = arith.constant 0 : index
    %c0_4 = arith.constant 0 : index
    %9 = arith.index_cast %5 : i32 to index
    %c0_5 = arith.constant 0 : index
    %10 = vector.load %arg2[%c0_3, %c0_4, %9, %c0_5] : memref<1x4x8x128xf32, #tpu.memory_space<vmem>>, vector<1x1x8x128xf32>
    %11 = vector.shape_cast %10 : vector<1x1x8x128xf32> to vector<8x128xf32>
    %c0_6 = arith.constant 0 : index
    %c1 = arith.constant 1 : index
    %12 = arith.index_cast %5 : i32 to index
    %c0_7 = arith.constant 0 : index
    %13 = vector.load %arg2[%c0_6, %c1, %12, %c0_7] : memref<1x4x8x128xf32, #tpu.memory_space<vmem>>, vector<1x1x8x128xf32>
    %14 = vector.shape_cast %13 : vector<1x1x8x128xf32> to vector<8x128xf32>
    %15 = arith.maximumf %11, %14 : vector<8x128xf32>
    %c0_8 = arith.constant 0 : index
    %c2 = arith.constant 2 : index
    %16 = arith.index_cast %5 : i32 to index
    %c0_9 = arith.constant 0 : index
    %17 = vector.load %arg2[%c0_8, %c2, %16, %c0_9] : memref<1x4x8x128xf32, #tpu.memory_space<vmem>>, vector<1x1x8x128xf32>
    %18 = vector.shape_cast %17 : vector<1x1x8x128xf32> to vector<8x128xf32>
    %19 = arith.maximumf %15, %18 : vector<8x128xf32>
    %c0_10 = arith.constant 0 : index
    %c3 = arith.constant 3 : index
    %20 = arith.index_cast %5 : i32 to index
    %c0_11 = arith.constant 0 : index
    %21 = vector.load %arg2[%c0_10, %c3, %20, %c0_11] : memref<1x4x8x128xf32, #tpu.memory_space<vmem>>, vector<1x1x8x128xf32>
    %22 = vector.shape_cast %21 : vector<1x1x8x128xf32> to vector<8x128xf32>
    %23 = arith.maximumf %19, %22 : vector<8x128xf32>
    %cst_12 = arith.constant 0.000000e+00 : f32
    %24 = vector.broadcast %cst_12 : f32 to vector<8x128xf32>
    %c0_13 = arith.constant 0 : index
    %c0_14 = arith.constant 0 : index
    %25 = arith.index_cast %5 : i32 to index
    %c0_15 = arith.constant 0 : index
    %26 = vector.load %arg2[%c0_13, %c0_14, %25, %c0_15] : memref<1x4x8x128xf32, #tpu.memory_space<vmem>>, vector<1x1x8x128xf32>
    %27 = vector.shape_cast %26 : vector<1x1x8x128xf32> to vector<8x128xf32>
    %28 = arith.subf %27, %23 : vector<8x128xf32>
    %29 = math.exp %28 : vector<8x128xf32>
    %c0_i32_16 = arith.constant 0 : i32
    %30 = vector.broadcast %c0_i32_16 : i32 to vector<8x128xi32>
    %31 = arith.cmpi eq, %8, %30 : vector<8x128xi32>
    %32 = arith.select %31, %27, %24 : vector<8x128xi1>, vector<8x128xf32>
    %c0_17 = arith.constant 0 : index
    %c1_18 = arith.constant 1 : index
    %33 = arith.index_cast %5 : i32 to index
    %c0_19 = arith.constant 0 : index
    %34 = vector.load %arg2[%c0_17, %c1_18, %33, %c0_19] : memref<1x4x8x128xf32, #tpu.memory_space<vmem>>, vector<1x1x8x128xf32>
    %35 = vector.shape_cast %34 : vector<1x1x8x128xf32> to vector<8x128xf32>
    %36 = arith.subf %35, %23 : vector<8x128xf32>
    %37 = math.exp %36 : vector<8x128xf32>
    %38 = arith.addf %29, %37 : vector<8x128xf32>
    %c1_i32 = arith.constant 1 : i32
    %39 = vector.broadcast %c1_i32 : i32 to vector<8x128xi32>
    %40 = arith.cmpi eq, %8, %39 : vector<8x128xi32>
    %41 = arith.select %40, %35, %32 : vector<8x128xi1>, vector<8x128xf32>
    %c0_20 = arith.constant 0 : index
    %c2_21 = arith.constant 2 : index
    %42 = arith.index_cast %5 : i32 to index
    %c0_22 = arith.constant 0 : index
    %43 = vector.load %arg2[%c0_20, %c2_21, %42, %c0_22] : memref<1x4x8x128xf32, #tpu.memory_space<vmem>>, vector<1x1x8x128xf32>
    %44 = vector.shape_cast %43 : vector<1x1x8x128xf32> to vector<8x128xf32>
    %45 = arith.subf %44, %23 : vector<8x128xf32>
    %46 = math.exp %45 : vector<8x128xf32>
    %47 = arith.addf %38, %46 : vector<8x128xf32>
    %c2_i32 = arith.constant 2 : i32
    %48 = vector.broadcast %c2_i32 : i32 to vector<8x128xi32>
    %49 = arith.cmpi eq, %8, %48 : vector<8x128xi32>
    %50 = arith.select %49, %44, %41 : vector<8x128xi1>, vector<8x128xf32>
    %c0_23 = arith.constant 0 : index
    %c3_24 = arith.constant 3 : index
    %51 = arith.index_cast %5 : i32 to index
    %c0_25 = arith.constant 0 : index
    %52 = vector.load %arg2[%c0_23, %c3_24, %51, %c0_25] : memref<1x4x8x128xf32, #tpu.memory_space<vmem>>, vector<1x1x8x128xf32>
    %53 = vector.shape_cast %52 : vector<1x1x8x128xf32> to vector<8x128xf32>
    %54 = arith.subf %53, %23 : vector<8x128xf32>
    %55 = math.exp %54 : vector<8x128xf32>
    %56 = arith.addf %47, %55 : vector<8x128xf32>
    %c3_i32 = arith.constant 3 : i32
    %57 = vector.broadcast %c3_i32 : i32 to vector<8x128xi32>
    %58 = arith.cmpi eq, %8, %57 : vector<8x128xi32>
    %59 = arith.select %58, %53, %50 : vector<8x128xi1>, vector<8x128xf32>
    %60 = arith.subf %59, %23 : vector<8x128xf32>
    %61 = math.log %56 : vector<8x128xf32>
    %62 = arith.subf %60, %61 : vector<8x128xf32>
    %63 = math.exp %62 : vector<8x128xf32>
    %cst_26 = arith.constant 1.000000e+00 : f32
    %64 = vector.broadcast %cst_26 : f32 to vector<8x128xf32>
    %65 = arith.subf %64, %63 : vector<8x128xf32>
    %cst_27 = arith.constant 0.000000e+00 : f32
    %66 = vector.broadcast %cst_27 : f32 to vector<8x128xf32>
    %67 = arith.maximumf %65, %66 : vector<8x128xf32>
    %68 = arith.mulf %67, %67 : vector<8x128xf32>
    %69 = arith.mulf %67, %68 : vector<8x128xf32>
    %70 = arith.mulf %68, %68 : vector<8x128xf32>
    %71 = arith.mulf %69, %70 : vector<8x128xf32>
    %cst_28 = arith.constant 0.000000e+00 : f32
    %72 = vector.broadcast %cst_28 : f32 to vector<8x128xf32>
    %73 = arith.subf %72, %71 : vector<8x128xf32>
    %74 = arith.mulf %73, %62 : vector<8x128xf32>
    %c0_i32_29 = arith.constant 0 : i32
    %75 = vector.broadcast %c0_i32_29 : i32 to vector<8x128xi32>
    %76 = arith.cmpi sge, %8, %75 : vector<8x128xi32>
    %cst_30 = arith.constant 0.000000e+00 : f32
    %77 = vector.broadcast %cst_30 : f32 to vector<8x128xf32>
    %78 = arith.select %76, %74, %77 : vector<8x128xi1>, vector<8x128xf32>
    %79 = arith.addf %3, %78 : vector<8x128xf32>
    %c1_i32_31 = arith.constant 1 : i32
    %c0_32 = arith.constant 0 : index
    %c0_33 = arith.constant 0 : index
    %80 = vector.load %arg5[%c0_32, %c0_33] : memref<8x128xf32, #tpu.memory_space<vmem>>, vector<8x128xf32>
    %81 = arith.addf %80, %79 : vector<8x128xf32>
    %c0_34 = arith.constant 0 : index
    %c0_35 = arith.constant 0 : index
    %82 = vector.load %arg5[%c0_34, %c0_35] : memref<8x128xf32, #tpu.memory_space<vmem>>, vector<8x128xf32>
    tpu.vector_store %arg5[%c0_34, %c0_35], %81 {strides = array<i32>} : memref<8x128xf32, #tpu.memory_space<vmem>>, vector<8x128xf32>,
    %c0_i32_36 = arith.constant 0 : i32
    %83 = arith.cmpi eq, %arg1, %c0_i32_36 : i32
    %84 = arith.extui %83 : i1 to i32
    %c0_i32_37 = arith.constant 0 : i32
    %85 = arith.cmpi ne, %84, %c0_i32_37 : i32
    scf.if %85 {
      %c0_38 = arith.constant 0 : index
      %c0_39 = arith.constant 0 : index
      %86 = vector.load %arg5[%c0_38, %c0_39] : memref<8x128xf32, #tpu.memory_space<vmem>>, vector<8x128xf32>
      %87 = vector.shape_cast %86 : vector<8x128xf32> to vector<1x8x128xf32>
      %cst_40 = arith.constant dense<0.000000e+00> : vector<1xf32>
      %88 = vector.multi_reduction <add>, %87, %cst_40 [1, 2] : vector<1x8x128xf32> to vector<1xf32>
      %89 = vector.shape_cast %88 : vector<1xf32> to vector<1x1x1xf32>
      %90 = vector.extract %89[0, 0, 0] : f32 from vector<1x1x1xf32>
      %91 = vector.broadcast %90 : f32 to vector<1x1x1xf32>
      %c0_41 = arith.constant 0 : index
      %c0_42 = arith.constant 0 : index
      %c0_43 = arith.constant 0 : index
      %92 = vector.load %arg4[%c0_41, %c0_42, %c0_43] : memref<1x1x1xf32, #tpu.memory_space<vmem>>, vector<1x1x1xf32>
      tpu.vector_store %arg4[%c0_41, %c0_42, %c0_43], %91 {strides = array<i32>} : memref<1x1x1xf32, #tpu.memory_space<vmem>>, vector<1x1x1xf32>,
    } else {
    }
    return
  }
  func.func @transform_0(%arg0: i32, %arg1: i32) -> (i32, i32, i32, i32) {
    %c0_i32 = arith.constant 0 : i32
    %c0_i32_0 = arith.constant 0 : i32
    %c0_i32_1 = arith.constant 0 : i32
    return %arg0, %c0_i32, %arg1, %c0_i32_0 : i32, i32, i32, i32
  }
  func.func @transform_1(%arg0: i32, %arg1: i32) -> (i32, i32, i32) {
    %c0_i32 = arith.constant 0 : i32
    %c0_i32_0 = arith.constant 0 : i32
    return %arg0, %arg1, %c0_i32 : i32, i32, i32
  }
  func.func @transform_2(%arg0: i32, %arg1: i32) -> (i32, i32, i32) {
    %c0_i32 = arith.constant 0 : i32
    %c0_i32_0 = arith.constant 0 : i32
    %c0_i32_1 = arith.constant 0 : i32
    return %arg0, %c0_i32, %c0_i32_0 : i32, i32, i32
  }
}

</mosaic_0001>

<llo_original>
// kernel: tpu_custom_call.1
$region0: #{tpu_custom_call.1}
  #allocation0 [shape = 'u32[]', space=smem, size = 0x4, offset = 0x4, fixed_abs, tag = 'smem constant byte address 0x4 - core index']
  #allocation1 [shape = 'u32[144,128]{1,0:T(1,128)}', space=vmem, size = 0x12000, scoped, tag = 'internal scratch']
  #allocation2 [shape = 'f32[8,128]{1,0:T(8,128)}', space=vmem, size = 0x1000, scoped, tag = 'scratch operand']
  %s0 = inlined_call_operand.hbm [shape: f32[2,4,8,128], index: 0, kind: input, shape index: {}]
  %s1 = inlined_call_operand.hbm [shape: s32[2,8,128], index: 1, kind: input, shape index: {}]
  %s2 = inlined_call_operand.vmem [shape: f32[2,1,1], index: 2, kind: output, shape index: {}]
  %s3 = sld [smem:[#allocation0]]
  $region57: #{tpu_custom_call.1} parent=0
    _
  %s5 = ssub.s32 1, %s3
  %s6 = scalar_select 0, %s5, %s3
  $region1: #{tpu_custom_call.1} parent=0
    #allocation3 [shape = 'u8[32768]{0}', space=vmem, size = 0x8000, scoped, tag = 'input window, operand 0']
    #allocation4 [shape = 's32[2]{0}', space=sflag, size = 0x8, scoped, tag = 'scoped memory for tpu_custom_call.1']
    #allocation5 [shape = 'u8[8192]{0}', space=vmem, size = 0x2000, scoped, tag = 'input window, operand 1']
    #allocation6 [shape = 's32[2]{0}', space=sflag, size = 0x8, scoped, tag = 'scoped memory for tpu_custom_call.1']
    %7 = vsyncpa [#allocation4], 0
    %s8 = scalar_lea.sflag [#allocation4], 1
    %9 = vsyncpa %s8, 0
    %10 = vsyncpa [#allocation6], 0
    %s11 = scalar_lea.sflag [#allocation6], 1
    %12 = vsyncpa %s11, 0
    loop: start=0, step=1, limit=4
    $region2: #{tpu_custom_call.1} parent=1 // loop_pre_header
      _
    $region3: #{tpu_custom_call.1} parent=1 // loop_header
      %s14 = sphi 0, %s18
      %p15 = scmp.ge.s32.totalorder %s14, 4
      %s21 = sphi 0, %s33
      %s22 = sphi 0, %s29
      %s23 = sphi 0, %s21
      %s24 = sphi 0, %s22
      %s25 = sphi 0, %s23
      %s26 = sphi 0, %s24
      %s38 = sphi 0, %s40
      %s41 = sphi 0, %s38
      %s42 = sphi 0, %s41
      %s58 = sphi 0, %s42
      %s66 = sphi 0, %s68
      %s69 = sphi 0, %s66
      %s70 = sphi 0, %s69
      %s86 = sphi 0, %s70
      %s92 = sphi 0, %s94
      %s95 = sphi 0, %s92
      %s96 = sphi 0, %s95
      %s112 = sphi 0, %s96
    $region4: #{tpu_custom_call.1} parent=1 // loop_header_branch
      %17 = sbr.rel (%p15) target = $region8
    $region5: #{tpu_custom_call.1} parent=1 // loop_body
      %s19 = ssub.s32 %s14, 1
      %s20 = ssub.s32 %s14, 2
      %s27 = sadd.s32 1, %s22
      %p28 = scmp.ge.s32.totalorder %s27, 1
      %s29 = scalar_select %p28, 0, %s27
      %s30 = sadd.s32 1, %s21
      %s31 = scalar_select %p28, %s30, %s21
      %p32 = scmp.ge.s32.totalorder %s31, 2
      %s33 = scalar_select %p32, 0, %s31
      %s34 = ssub.s32 %s21, %s33
      %s35 = ssub.s32 %s22, %s29
      %s36 = sor.u32 %s34, %s35
      %p37 = scmp.eq.s32.totalorder %s36, 0
      %s39 = sadd.s32 %s38, 1
      %s40 = scalar_select %p37, %s38, %s39
      %p43 = pneg %p37
      %p44 = scmp.eq.s32.totalorder %s14, 1
      %p45 = por %p43, %p44
      %p46 = scmp.ne.s32.totalorder %s38, %s41
      %p47 = scmp.eq.s32.totalorder %s14, 0
      %p48 = por %p46, %p47
      %p49 = scmp.ne.s32.totalorder %s38, %s41
      %p50 = scmp.eq.s32.totalorder %s19, 1
      %p51 = por %p49, %p50
      %p52 = scmp.ne.s32.totalorder %s41, %s42
      %p53 = scmp.eq.s32.totalorder %s19, 0
      %p54 = por %p52, %p53
      %p55 = scmp.ne.s32.totalorder %s41, %s42
      %p56 = scmp.eq.s32.totalorder %s20, 1
      %p57 = por %p55, %p56
      %p59 = scmp.ne.s32.totalorder %s42, %s58
      %p60 = scmp.eq.s32.totalorder %s20, 0
      %p61 = por %p59, %p60
      %s62 = ssub.s32 %s21, %s33
      %s63 = ssub.s32 %s22, %s29
      %s64 = sor.u32 %s62, %s63
      %p65 = scmp.eq.s32.totalorder %s64, 0
      %s67 = sadd.s32 %s66, 1
      %s68 = scalar_select %p65, %s66, %s67
      %p71 = pneg %p65
      %p72 = scmp.eq.s32.totalorder %s14, 1
      %p73 = por %p71, %p72
      %p74 = scmp.ne.s32.totalorder %s66, %s69
      %p75 = scmp.eq.s32.totalorder %s14, 0
      %p76 = por %p74, %p75
      %p77 = scmp.ne.s32.totalorder %s66, %s69
      %p78 = scmp.eq.s32.totalorder %s19, 1
      %p79 = por %p77, %p78
      %p80 = scmp.ne.s32.totalorder %s69, %s70
      %p81 = scmp.eq.s32.totalorder %s19, 0
      %p82 = por %p80, %p81
      %p83 = scmp.ne.s32.totalorder %s69, %s70
      %p84 = scmp.eq.s32.totalorder %s20, 1
      %p85 = por %p83, %p84
      %p87 = scmp.ne.s32.totalorder %s70, %s86
      %p88 = scmp.eq.s32.totalorder %s20, 0
      %p89 = por %p87, %p88
      %s90 = ssub.s32 %s21, %s33
      %p91 = scmp.eq.s32.totalorder %s90, 0
      %s93 = sadd.s32 %s92, 1
      %s94 = scalar_select %p91, %s92, %s93
      %p97 = pneg %p91
      %p98 = scmp.eq.s32.totalorder %s14, 1
      %p99 = por %p97, %p98
      %p100 = scmp.ne.s32.totalorder %s92, %s95
      %p101 = scmp.eq.s32.totalorder %s14, 0
      %p102 = por %p100, %p101
      %p103 = scmp.ne.s32.totalorder %s92, %s95
      %p104 = scmp.eq.s32.totalorder %s19, 1
      %p105 = por %p103, %p104
      %p106 = scmp.ne.s32.totalorder %s95, %s96
      %p107 = scmp.eq.s32.totalorder %s19, 0
      %p108 = por %p106, %p107
      %p109 = scmp.ne.s32.totalorder %s95, %s96
      %p110 = scmp.eq.s32.totalorder %s20, 1
      %p111 = por %p109, %p110
      %p113 = scmp.ne.s32.totalorder %s96, %s112
      %p114 = scmp.eq.s32.totalorder %s20, 0
      %p115 = por %p113, %p114
      %p116 = scmp.le.s32.totalorder 1, %s14
      %p117 = scmp.lt.s32.totalorder %s14, 3
      %p118 = pnand %p116, %p117
      %p119 = pneg %p118
      // Predicated region
      $region9: #{tpu_custom_call.1} parent=5 // pred_check
        _
      $region10: #{tpu_custom_call.1} parent=5 // pred_check_branch
        %121 = sbr.rel (%p118) target = $region12
      $region11: #{tpu_custom_call.1} parent=5 // pred_region
        %s122 = ssub.s32 %s14, 1
      $region12: #{tpu_custom_call.1} parent=5 // pred_fallthru
        _
      %p123 = scmp.lt.s32.totalorder %s14, 2
      // Predicated region
      $region13: #{tpu_custom_call.1} parent=5 // pred_check
        %p124 = pneg %p123
      $region14: #{tpu_custom_call.1} parent=5 // pred_check_branch
        %126 = sbr.rel (%p124) target = $region16
      $region15: #{tpu_custom_call.1} parent=5 // pred_region
        // Predicated region
        $region17: #{tpu_custom_call.1} parent=15 // pred_check
          %p127 = pneg %p48
        $region18: #{tpu_custom_call.1} parent=15 // pred_check_branch
          %129 = sbr.rel (%p127) target = $region20
        $region19: #{tpu_custom_call.1} parent=15 // pred_region
          %s130 = sand.u32 %s38, 1
          %s131 = scalar_lea.sflag [#allocation4], %s130
          %s132 = sand.u32 %s38, 1
          %s133 = smul.addr %s132, 32
          %s134 = scalar_lea.vmem [#allocation3], %s133
          %s136 = ssub.s32 512, 512
          %137 = vsyncadd %s131, %s136
          %s138 = smul.addr %s21, 4
          %s139 = sadd.s32 %s22, %s138
          %s140 = smul.addr %s139, 128
          %s141 = scalar_lea.hbm %s0, %s140
          %s142 = sshll.u32 %s134, 4
          %s143 = int_to_ptr.vmem [resolvable:$true] %s142
          %148 = dma.hbm_to_vmem [thread:$0]  %s141, 512, %s143, %s131, 128, 128, 8
        $region20: #{tpu_custom_call.1} parent=15 // pred_fallthru
          _
        // Predicated region
        $region21: #{tpu_custom_call.1} parent=15 // pred_check
          %p149 = pneg %p76
        $region22: #{tpu_custom_call.1} parent=15 // pred_check_branch
          %151 = sbr.rel (%p149) target = $region24
        $region23: #{tpu_custom_call.1} parent=15 // pred_region
          %s152 = sand.u32 %s66, 1
          %s153 = scalar_lea.sflag [#allocation6], %s152
          %s154 = sand.u32 %s66, 1
          %s155 = smul.addr %s154, 8
          %s156 = scalar_lea.vmem [#allocation5], %s155
          %s158 = ssub.s32 128, 128
          %159 = vsyncadd %s153, %s158
          %s160 = sadd.s32 %s22, %s21
          %s161 = smul.addr %s160, 128
          %s162 = scalar_lea.hbm %s1, %s161
          %s164 = sshll.u32 %s156, 4
          %s165 = int_to_ptr.vmem [resolvable:$true] %s164
          %167 = dma.hbm_to_vmem [thread:$0]  %s162, 128, %s165, %s153
        $region24: #{tpu_custom_call.1} parent=15 // pred_fallthru
          _
      $region16: #{tpu_custom_call.1} parent=5 // pred_fallthru
        _
      %p168 = scmp.le.s32.totalorder 1, %s14
      %p169 = scmp.lt.s32.totalorder %s14, 3
      %p170 = pnand %p168, %p169
      %p171 = pneg %p170
      // Predicated region
      $region25: #{tpu_custom_call.1} parent=5 // pred_check
        _
      $region26: #{tpu_custom_call.1} parent=5 // pred_check_branch
        %173 = sbr.rel (%p170) target = $region28
      $region27: #{tpu_custom_call.1} parent=5 // pred_region
        %s174 = ssub.s32 %s14, 1
        %s175 = sand.u32 %s41, 1
        %s176 = scalar_lea.sflag [#allocation4], %s175
        %s177 = sand.u32 %s41, 1
        %s178 = smul.addr %s177, 32
        %s179 = scalar_lea.vmem [#allocation3], %s178
        // Predicated region
        $region29: #{tpu_custom_call.1} parent=27 // pred_check
          %p180 = pneg %p54
        $region30: #{tpu_custom_call.1} parent=27 // pred_check_branch
          %182 = sbr.rel (%p180) target = $region32
        $region31: #{tpu_custom_call.1} parent=27 // pred_region
          %183 = dma.done %s176, 512
        $region32: #{tpu_custom_call.1} parent=27 // pred_fallthru
          _
        %s184 = sand.u32 %s69, 1
        %s185 = scalar_lea.sflag [#allocation6], %s184
        %s186 = sand.u32 %s69, 1
        %s187 = smul.addr %s186, 8
        %s188 = scalar_lea.vmem [#allocation5], %s187
        // Predicated region
        $region33: #{tpu_custom_call.1} parent=27 // pred_check
          %p189 = pneg %p82
        $region34: #{tpu_custom_call.1} parent=27 // pred_check_branch
          %191 = sbr.rel (%p189) target = $region36
        $region35: #{tpu_custom_call.1} parent=27 // pred_region
          %192 = dma.done %s185, 128
        $region36: #{tpu_custom_call.1} parent=27 // pred_fallthru
          _
        %s193 = sand.u32 %s41, 1
        %s194 = scalar_lea.sflag [#allocation4], %s193
        %s195 = sand.u32 %s41, 1
        %s196 = smul.addr %s195, 32
        %s197 = scalar_lea.vmem [#allocation3], %s196
        %p198 = pneg %p54
        %p199 = pneg %p51
        %s200 = sand.u32 %s69, 1
        %s201 = scalar_lea.sflag [#allocation6], %s200
        %s202 = sand.u32 %s69, 1
        %s203 = smul.addr %s202, 8
        %s204 = scalar_lea.vmem [#allocation5], %s203
        %p205 = pneg %p82
        %p206 = pneg %p79
        %p207 = pneg %p108
        %p208 = pneg %p105
        %p209 = scmp.lt.s32.totalorder %s23, 1
        %s210 = scalar_select %p209, %s23, 1
        %s211 = scalar_lea.vmem %s2, %s210
        %p212 = scmp.lt.s32.totalorder %s23, 1
        %s213 = scalar_select %p212, %s23, 1
        %s214 = scalar_lea.vmem %s2, %s213
        %p215 = scmp.eq.s32.totalorder %s24, 0
        // Predicated region
        $region37: #{tpu_custom_call.1} parent=27 // pred_check
          %p216 = pneg %p215
        $region38: #{tpu_custom_call.1} parent=27 // pred_check_branch
          %218 = sbr.rel (%p216) target = $region40
        $region39: #{tpu_custom_call.1} parent=27 // pred_region
          %219 = vst [vmem:[#allocation2] sm:$0xff] 0.0
        $region40: #{tpu_custom_call.1} parent=27 // pred_fallthru
          _
        %v220 = vld [vmem:[%s188] sm:$0xff]
        %v221 = vld [vmem:[%s179] sm:$0xff]
        %s222 = sadd.s32 0, 8
        %s223 = scalar_lea.vmem %s179, %s222 [#allocation3]
        %v224 = vld [vmem:[%s223] sm:$0xff]
        %v225 = vmax.f32 %v221, %v224
        %s226 = sadd.s32 0, 16
        %s227 = scalar_lea.vmem %s179, %s226 [#allocation3]
        %v228 = vld [vmem:[%s227] sm:$0xff]
        %v229 = vmax.f32 %v225, %v228
        %s230 = sadd.s32 0, 24
        %s231 = scalar_lea.vmem %s179, %s230 [#allocation3]
        %v232 = vld [vmem:[%s231] sm:$0xff]
        %v233 = vmax.f32 %v229, %v232
        %v234 = vsub.f32 %v221, %v233
        %v235 = vmul.f32 %v234, 1.442695
        %v236 = vpow.pop %v235
        %vm237 = vcmp.eq.s32.totalorder %v220, 0
        %v238 = vsel %vm237, %v221, 0.0
        %v239 = vsub.f32 %v224, %v233
        %v240 = vmul.f32 %v239, 1.442695
        %v241 = vpow.pop %v240
        %v242 = vadd.f32 %v236, %v241
        %vm243 = vcmp.eq.s32.totalorder %v220, 1
        %v244 = vsel %vm243, %v224, %v238
        %v245 = vsub.f32 %v228, %v233
        %v246 = vmul.f32 %v245, 1.442695
        %v247 = vpow.pop %v246
        %v248 = vadd.f32 %v242, %v247
        %vm249 = vcmp.eq.s32.totalorder %v220, 2
        %v250 = vsel %vm249, %v228, %v244
        %v251 = vsub.f32 %v232, %v233
        %v252 = vmul.f32 %v251, 1.442695
        %v253 = vpow.pop %v252
        %v254 = vadd.f32 %v248, %v253
        %vm255 = vcmp.eq.s32.totalorder %v220, 3
        %v256 = vsel %vm255, %v232, %v250
        %v257 = vsub.f32 %v256, %v233
        %v258 = vlog2.pop %v254
        %v259 = vmul.f32 %v258, 0.6931472
        %v260 = vsub.f32 %v257, %v259
        %v261 = vmul.f32 %v260, 1.442695
        %v262 = vpow.pop %v261
        %v263 = vsub.f32 1.0, %v262
        %v264 = vmax.f32 %v263, 0.0
        %v265 = vmul.f32 %v264, %v264
        %v266 = vmul.f32 %v264, %v265
        %v267 = vmul.f32 %v265, %v265
        %v268 = vmul.f32 %v266, %v267
        %v269 = vsub.f32 0.0, %v268
        %v270 = vmul.f32 %v269, %v260
        %vm271 = vcmp.ge.s32.totalorder %v220, 0
        %v272 = vsel %vm271, %v270, 0.0
        %v273 = vadd.f32 %v272, 0.0
        %v274 = vld [vmem:[#allocation2] sm:$0xff]
        %v275 = vadd.f32 %v274, %v273
        %276 = vst [vmem:[#allocation2] sm:$0xff] %v275
        // Predicated region
        $region41: #{tpu_custom_call.1} parent=27 // pred_check
          %p277 = pneg %p215
        $region42: #{tpu_custom_call.1} parent=27 // pred_check_branch
          %279 = sbr.rel (%p277) target = $region44
        $region43: #{tpu_custom_call.1} parent=27 // pred_region
          %v280 = vld [vmem:[#allocation2] sm:$0xff]
          %281 = vadd.xlane.f32.xlu0 %v280
          %v282 = vpop.xlane.xlu0 %281
          %v283 = vrot.slane %v282, 4
          %v284 = vadd.f32 %v282, %v283
          %v285 = vrot.slane %v284, 2
          %v286 = vadd.f32 %v284, %v285
          %v287 = vrot.slane %v286, 1
          %v288 = vadd.f32 %v286, %v287
          %s289 = vtos %v288
          %v290 = vstv %s289
          %vm291 = vcmask 0
          %292 = vst.msk [vmem:[%s214] sm:$0x1] %vm291, %v290
        $region44: #{tpu_custom_call.1} parent=27 // pred_fallthru
          _
        %p293 = scmp.lt.s32.totalorder %s23, 1
        %s294 = scalar_select %p293, %s23, 1
        %s295 = scalar_lea.vmem %s2, %s294
        // Predicated region
        $region45: #{tpu_custom_call.1} parent=27 // pred_check
          %p296 = pneg %p105
        $region46: #{tpu_custom_call.1} parent=27 // pred_check_branch
          %298 = sbr.rel (%p296) target = $region48
        $region47: #{tpu_custom_call.1} parent=27 // pred_region
          _
        $region48: #{tpu_custom_call.1} parent=27 // pred_fallthru
          _
      $region28: #{tpu_custom_call.1} parent=5 // pred_fallthru
        _
      %p299 = scmp.le.s32.totalorder 2, %s14
      // Predicated region
      $region49: #{tpu_custom_call.1} parent=5 // pred_check
        %p300 = pneg %p299
      $region50: #{tpu_custom_call.1} parent=5 // pred_check_branch
        %302 = sbr.rel (%p300) target = $region52
      $region51: #{tpu_custom_call.1} parent=5 // pred_region
        %s303 = ssub.s32 %s14, 2
        // Predicated region
        $region53: #{tpu_custom_call.1} parent=51 // pred_check
          %p304 = pneg %p111
        $region54: #{tpu_custom_call.1} parent=51 // pred_check_branch
          %306 = sbr.rel (%p304) target = $region56
        $region55: #{tpu_custom_call.1} parent=51 // pred_region
          %p307 = scmp.lt.s32.totalorder %s25, 1
          %s308 = scalar_select %p307, %s25, 1
          %s309 = scalar_lea.vmem %s2, %s308
        $region56: #{tpu_custom_call.1} parent=51 // pred_fallthru
          _
      $region52: #{tpu_custom_call.1} parent=5 // pred_fallthru
        _
    $region6: #{tpu_custom_call.1} parent=1 // loop_footer
      %s18 = sadd.s32 1, %s14
    $region7: #{tpu_custom_call.1} parent=1 // loop_footer_branch
      %13 = sbr.rel target = $region3
    $region8: #{tpu_custom_call.1} parent=1 // loop_exit
      _
    %310 = vsyncpa [#allocation4], 1
    %s311 = scalar_lea.sflag [#allocation4], 1
    %312 = vsyncpa %s311, 1
    %313 = vsyncpa [#allocation6], 1
    %s314 = scalar_lea.sflag [#allocation6], 1
    %315 = vsyncpa %s314, 1

</llo_original>
